<compile_context>
chip_gen: v5e
topology: v5e:2x2
jax: 0.10.0
libtpu: 0.0.40
codegen_flags: <defaults>
</compile_context>

<pallas_src>
import jax
import jax.numpy as jnp
from jax.scipy.linalg import block_diag
from jax.experimental import pallas as pl
from jax.experimental.pallas import tpu as pltpu


def packed_entropy_kernel(x_ref, w1_ref, b1_ref, w2_ref, b2_ref, w3t_ref, b3_ref,
                          out_ref):
    # x: (bb, D) f32 -> bf16 for the MXU; all accumulation in f32.
    x = x_ref[...].astype(jnp.bfloat16)

    # Layer 1: (bb, D) @ (D, CHp) -> (bb, CHp), bias+ReLU in f32.
    h1 = jnp.dot(x, w1_ref[...], preferred_element_type=jnp.float32)
    h1 = jnp.maximum(h1 + b1_ref[...], 0.0)

    # Layer 2: block-diagonal packed weight (no cross-critic leak).
    h2 = jnp.dot(h1.astype(jnp.bfloat16), w2_ref[...],
                 preferred_element_type=jnp.float32)
    h2 = jnp.maximum(h2 + b2_ref[...], 0.0)

    # Layer 3, emitted critic-major: contract the hidden dim of w3t (C, CHp)
    # against the hidden dim of h2 (bb, CHp) -> (C, bb), lane-dense on batch.
    q_cb = jax.lax.dot_general(
        w3t_ref[...], h2.astype(jnp.bfloat16),
        dimension_numbers=(((1,), (1,)), ((), ())),
        preferred_element_type=jnp.float32)
    out_ref[...] = q_cb + b3_ref[...]            # (C, bb) + (C, 1)


def pack_params(params, *, lane_multiple=128, matmul_dtype=jnp.bfloat16):
    """Pack per-critic params (C-stacked) into a lane-packed, 128-padded layout.

    Inputs:  w1 [C,D,H], b1 [C,1,H], w2 [C,H,H], b2 [C,1,H], w3 [C,H,1], b3 [C,1,1]
    Outputs: w1p [D,CHp], b1p [1,CHp], w2p [CHp,CHp], b2p [1,CHp],
             w3t [C,CHp], b3p [C,1]            (CHp = round_up(C*H, 128))
    """
    w1, b1, w2, b2, w3, b3 = params
    C, D, H = w1.shape
    CH = C * H
    CHp = -(-CH // lane_multiple) * lane_multiple
    pad = CHp - CH

    w1p = jnp.transpose(w1, (1, 0, 2)).reshape(D, CH)
    w1p = jnp.pad(w1p, ((0, 0), (0, pad)))
    b1p = jnp.pad(b1.reshape(1, CH), ((0, 0), (0, pad)))

    # TODO(synk): block-diag W2 is C^2*H^2 FLOPs/VMEM; if C*H grows past one MXU
    # tile, tile layer 2 per critic block instead of materializing the zeros.
    w2p = jnp.pad(block_diag(*[w2[c] for c in range(C)]), ((0, pad), (0, pad)))
    b2p = jnp.pad(b2.reshape(1, CH), ((0, 0), (0, pad)))

    # (CH, C) -> transposed (C, CH) -> pad hidden cols; pad units cannot leak.
    w3t = jnp.pad(block_diag(*[w3[c] for c in range(C)]).T, ((0, 0), (0, pad)))
    b3p = b3.reshape(C, 1)

    return (w1p.astype(matmul_dtype), b1p.astype(jnp.float32),
            w2p.astype(matmul_dtype), b2p.astype(jnp.float32),
            w3t.astype(matmul_dtype), b3p.astype(jnp.float32))


def entropy_network_forward(state, packed_params, *, block_b=512):
    """Returns stacked q-values, shape (C, B, 1) (critic-major, PyTorch-facing)."""
    w1p, b1p, w2p, b2p, w3t, b3p = packed_params
    x = state.astype(jnp.float32)            # PyTorch semantics: state -> float32
    B, D = x.shape
    C, CHp = w3t.shape

    # Batch block: sublane-aligned; pad B to a multiple so every block is full.
    bb = min(block_b, B)
    bb = -(-bb // 8) * 8
    Bp = -(-B // bb) * bb
    if Bp != B:
        x = jnp.pad(x, ((0, Bp - B), (0, 0)))

    flops = 2 * Bp * (D * CHp + CHp * CHp + CHp * C)
    bytes_accessed = int(x.size) * x.dtype.itemsize \
        + sum(int(a.size) * a.dtype.itemsize for a in packed_params) \
        + int(C * Bp) * 4
    cost = pl.CostEstimate(flops=int(flops), transcendentals=0,
                           bytes_accessed=int(bytes_accessed))

    def const(shape):                         # resident weight: same block every step
        return pl.BlockSpec(shape, lambda i: (0, 0))

    out_cb = pl.pallas_call(
        packed_entropy_kernel,
        out_shape=jax.ShapeDtypeStruct((C, Bp), jnp.float32),
        grid=(Bp // bb,),
        in_specs=[pl.BlockSpec((bb, D), lambda i: (i, 0)),
                  const(w1p.shape), const(b1p.shape),
                  const(w2p.shape), const(b2p.shape),
                  const(w3t.shape), const(b3p.shape)],
        out_specs=pl.BlockSpec((C, bb), lambda i: (0, i)),
        compiler_params=pltpu.CompilerParams(dimension_semantics=("parallel",)),
        cost_estimate=cost,
    )(x, w1p, b1p, w2p, b2p, w3t, b3p)

    # (C, Bp) -> (C, B, 1); the trailing-dim view is free metadata plumbing.
    return out_cb[:, :B, None]


def init_params(key, num_critics, obs_dim, hidden_dim):
    """Deterministic init mirroring nn.Linear default (U[-1/sqrt(fan_in), +])."""
    keys = jax.random.split(key, 6)

    def uniform(k, shape, fan_in):
        bound = 1.0 / jnp.sqrt(jnp.float32(fan_in))
        return jax.random.uniform(k, shape, jnp.float32, -bound, bound)

    C, D, H = num_critics, obs_dim, hidden_dim
    w1 = uniform(keys[0], (C, D, H), D)
    b1 = uniform(keys[1], (C, 1, H), D)
    w2 = uniform(keys[2], (C, H, H), H)
    b2 = uniform(keys[3], (C, 1, H), H)
    w3 = uniform(keys[4], (C, H, 1), H)
    b3 = uniform(keys[5], (C, 1, 1), H)
    return (w1, b1, w2, b2, w3, b3)


def reference_forward(state, params, compute_dtype=jnp.float32):
    """Per-critic reference. compute_dtype=f32 matches PyTorch exactly;
    compute_dtype=bf16 replicates the kernel's mixed-precision numerics."""
    w1, b1, w2, b2, w3, b3 = params
    x = state.astype(jnp.float32)
    outs = []
    for c in range(w1.shape[0]):
        h1 = jnp.dot(x.astype(compute_dtype), w1[c].astype(compute_dtype),
                     preferred_element_type=jnp.float32) + b1[c]
        h1 = jnp.maximum(h1, 0.0)
        h2 = jnp.dot(h1.astype(compute_dtype), w2[c].astype(compute_dtype),
                     preferred_element_type=jnp.float32) + b2[c]
        h2 = jnp.maximum(h2, 0.0)
        q = jnp.dot(h2.astype(compute_dtype), w3[c].astype(compute_dtype),
                    preferred_element_type=jnp.float32) + b3[c]
        outs.append(q)
    return outs


if __name__ == "__main__":
    B, OBS_DIM, HIDDEN, NUM_CRITICS = 256, 16, 32, 3

    key = jax.random.PRNGKey(0)
    k_state, k_params = jax.random.split(key)
    state = jax.random.normal(k_state, (B, OBS_DIM), dtype=jnp.float32)
    params = init_params(k_params, NUM_CRITICS, OBS_DIM, HIDDEN)

    packed = pack_params(params)
    # block_b=128 -> 2 grid steps here, exercising the parallel batch grid.
    q_stacked = entropy_network_forward(state, packed, block_b=128)   # (C, B, 1)
    q_stacked = jax.block_until_ready(q_stacked)
    assert q_stacked.shape == (NUM_CRITICS, B, 1)

    # Tight check vs. a reference with identical bf16-operand / f32-acc numerics,
    # plus a looser check vs. the exact f32 PyTorch-equivalent forward.
    q_ref_bf16 = reference_forward(state, params, compute_dtype=jnp.bfloat16)
    q_ref_f32 = reference_forward(state, params, compute_dtype=jnp.float32)
    for c in range(NUM_CRITICS):
        assert jnp.allclose(q_stacked[c], q_ref_bf16[c], atol=2e-3, rtol=2e-3), c
        assert jnp.allclose(q_stacked[c], q_ref_f32[c], atol=5e-2, rtol=5e-2), c

    print("KERNEL_OK")
</pallas_src>

<mosaic_0001>
module attributes {stable_mosaic.version = 11 : i64} {
  func.func @packed_entropy_kernel(%arg0: i32, %arg1: memref<128x16xf32, #tpu.memory_space<vmem>>, %arg2: memref<16x128xbf16, #tpu.memory_space<vmem>>, %arg3: memref<1x128xf32, #tpu.memory_space<vmem>>, %arg4: memref<128x128xbf16, #tpu.memory_space<vmem>>, %arg5: memref<1x128xf32, #tpu.memory_space<vmem>>, %arg6: memref<3x128xbf16, #tpu.memory_space<vmem>>, %arg7: memref<3x1xf32, #tpu.memory_space<vmem>>, %arg8: memref<3x128xf32, #tpu.memory_space<vmem>>) attributes {dimension_semantics = [#tpu.dimension_semantics<parallel>], iteration_bounds = array<i64: 2>, scalar_prefetch = 0 : i64, scratch_operands = 0 : i64, tpu.core_type = #tpu.core_type<tc>, window_params = [{transform_indices = @transform_0, window_bounds = array<i64: 128, 16>}, {pipeline_mode = #tpu.pipeline_mode<synchronous>, transform_indices = @transform_1, window_bounds = array<i64: 16, 128>}, {pipeline_mode = #tpu.pipeline_mode<synchronous>, transform_indices = @transform_2, window_bounds = array<i64: 1, 128>}, {pipeline_mode = #tpu.pipeline_mode<synchronous>, transform_indices = @transform_3, window_bounds = array<i64: 128, 128>}, {pipeline_mode = #tpu.pipeline_mode<synchronous>, transform_indices = @transform_4, window_bounds = array<i64: 1, 128>}, {pipeline_mode = #tpu.pipeline_mode<synchronous>, transform_indices = @transform_5, window_bounds = array<i64: 3, 128>}, {pipeline_mode = #tpu.pipeline_mode<synchronous>, transform_indices = @transform_6, window_bounds = array<i64: 3, 1>}, {transform_indices = @transform_7, window_bounds = array<i64: 3, 128>}]} {
    %c0 = arith.constant 0 : index
    %c0_0 = arith.constant 0 : index
    %0 = vector.load %arg1[%c0, %c0_0] : memref<128x16xf32, #tpu.memory_space<vmem>>, vector<128x16xf32>
    %1 = arith.truncf %0 : vector<128x16xf32> to vector<128x16xbf16>
    %c0_1 = arith.constant 0 : index
    %c0_2 = arith.constant 0 : index
    %2 = vector.load %arg2[%c0_1, %c0_2] : memref<16x128xbf16, #tpu.memory_space<vmem>>, vector<16x128xbf16>
    %cst = arith.constant dense<0.000000e+00> : vector<128x128xf32>
    %3 = tpu.matmul %1, %2, %cst {dimension_numbers = #tpu.dot_dimension_numbers<[1], [0], [0], [1], [0, 0, 1, 1], [], []>} : vector<128x16xbf16>, vector<16x128xbf16>, vector<128x128xf32> -> vector<128x128xf32>
    %c0_3 = arith.constant 0 : index
    %c0_4 = arith.constant 0 : index
    %4 = vector.load %arg3[%c0_3, %c0_4] : memref<1x128xf32, #tpu.memory_space<vmem>>, vector<1x128xf32>
    %5 = vector.broadcast %4 : vector<1x128xf32> to vector<128x128xf32>
    %6 = arith.addf %3, %5 : vector<128x128xf32>
    %cst_5 = arith.constant 0.000000e+00 : f32
    %7 = vector.broadcast %cst_5 : f32 to vector<128x128xf32>
    %8 = arith.maximumf %6, %7 : vector<128x128xf32>
    %9 = arith.truncf %8 : vector<128x128xf32> to vector<128x128xbf16>
    %c0_6 = arith.constant 0 : index
    %c0_7 = arith.constant 0 : index
    %10 = vector.load %arg4[%c0_6, %c0_7] : memref<128x128xbf16, #tpu.memory_space<vmem>>, vector<128x128xbf16>
    %cst_8 = arith.constant dense<0.000000e+00> : vector<128x128xf32>
    %11 = tpu.matmul %9, %10, %cst_8 {dimension_numbers = #tpu.dot_dimension_numbers<[1], [0], [0], [1], [0, 0, 1, 1], [], []>} : vector<128x128xbf16>, vector<128x128xbf16>, vector<128x128xf32> -> vector<128x128xf32>
    %c0_9 = arith.constant 0 : index
    %c0_10 = arith.constant 0 : index
    %12 = vector.load %arg5[%c0_9, %c0_10] : memref<1x128xf32, #tpu.memory_space<vmem>>, vector<1x128xf32>
    %13 = vector.broadcast %12 : vector<1x128xf32> to vector<128x128xf32>
    %14 = arith.addf %11, %13 : vector<128x128xf32>
    %cst_11 = arith.constant 0.000000e+00 : f32
    %15 = vector.broadcast %cst_11 : f32 to vector<128x128xf32>
    %16 = arith.maximumf %14, %15 : vector<128x128xf32>
    %c0_12 = arith.constant 0 : index
    %c0_13 = arith.constant 0 : index
    %17 = vector.load %arg6[%c0_12, %c0_13] : memref<3x128xbf16, #tpu.memory_space<vmem>>, vector<3x128xbf16>
    %18 = arith.truncf %16 : vector<128x128xf32> to vector<128x128xbf16>
    %cst_14 = arith.constant dense<0.000000e+00> : vector<3x128xf32>
    %19 = tpu.matmul %17, %18, %cst_14 {dimension_numbers = #tpu.dot_dimension_numbers<[1], [1], [0], [0], [0, 0, 1, 0], [], []>} : vector<3x128xbf16>, vector<128x128xbf16>, vector<3x128xf32> -> vector<3x128xf32>
    %c0_15 = arith.constant 0 : index
    %c0_16 = arith.constant 0 : index
    %20 = vector.load %arg7[%c0_15, %c0_16] : memref<3x1xf32, #tpu.memory_space<vmem>>, vector<3x1xf32>
    %21 = vector.broadcast %20 : vector<3x1xf32> to vector<3x128xf32>
    %22 = arith.addf %19, %21 : vector<3x128xf32>
    %c0_17 = arith.constant 0 : index
    %c0_18 = arith.constant 0 : index
    %23 = vector.load %arg8[%c0_17, %c0_18] : memref<3x128xf32, #tpu.memory_space<vmem>>, vector<3x128xf32>
    tpu.vector_store %arg8[%c0_17, %c0_18], %22 {strides = array<i32>} : memref<3x128xf32, #tpu.memory_space<vmem>>, vector<3x128xf32>,
    return
  }
  func.func @transform_0(%arg0: i32) -> (i32, i32) {
    %c0_i32 = arith.constant 0 : i32
    %c0_i32_0 = arith.constant 0 : i32
    return %arg0, %c0_i32 : i32, i32
  }
  func.func @transform_1(%arg0: i32) -> (i32, i32) {
    %c0_i32 = arith.constant 0 : i32
    %c0_i32_0 = arith.constant 0 : i32
    %c0_i32_1 = arith.constant 0 : i32
    return %c0_i32, %c0_i32_0 : i32, i32
  }
  func.func @transform_2(%arg0: i32) -> (i32, i32) {
    %c0_i32 = arith.constant 0 : i32
    %c0_i32_0 = arith.constant 0 : i32
    %c0_i32_1 = arith.constant 0 : i32
    return %c0_i32, %c0_i32_0 : i32, i32
  }
  func.func @transform_3(%arg0: i32) -> (i32, i32) {
    %c0_i32 = arith.constant 0 : i32
    %c0_i32_0 = arith.constant 0 : i32
    %c0_i32_1 = arith.constant 0 : i32
    return %c0_i32, %c0_i32_0 : i32, i32
  }
  func.func @transform_4(%arg0: i32) -> (i32, i32) {
    %c0_i32 = arith.constant 0 : i32
    %c0_i32_0 = arith.constant 0 : i32
    %c0_i32_1 = arith.constant 0 : i32
    return %c0_i32, %c0_i32_0 : i32, i32
  }
  func.func @transform_5(%arg0: i32) -> (i32, i32) {
    %c0_i32 = arith.constant 0 : i32
    %c0_i32_0 = arith.constant 0 : i32
    %c0_i32_1 = arith.constant 0 : i32
    return %c0_i32, %c0_i32_0 : i32, i32
  }
  func.func @transform_6(%arg0: i32) -> (i32, i32) {
    %c0_i32 = arith.constant 0 : i32
    %c0_i32_0 = arith.constant 0 : i32
    %c0_i32_1 = arith.constant 0 : i32
    return %c0_i32, %c0_i32_0 : i32, i32
  }
  func.func @transform_7(%arg0: i32) -> (i32, i32) {
    %c0_i32 = arith.constant 0 : i32
    %c0_i32_0 = arith.constant 0 : i32
    return %c0_i32, %arg0 : i32, i32
  }
}

</mosaic_0001>

<llo_original>
// kernel: tpu_custom_call.1
$region0: #{tpu_custom_call.1}
  #allocation0 [shape = 'u32[]', space=smem, size = 0x4, offset = 0x4, fixed_abs, tag = 'smem constant byte address 0x4 - core index']
  #allocation1 [shape = 'u32[72,128]{1,0:T(1,128)}', space=vmem, size = 0x9000, scoped, tag = 'internal scratch']
  %s0 = inlined_call_operand.vmem [shape: f32[256,16], index: 0, kind: input, shape index: {}]
  %s1 = inlined_call_operand.vmem [shape: bf16[16,128], index: 1, kind: input, shape index: {}]
  %s2 = inlined_call_operand.vmem [shape: f32[1,128], index: 2, kind: input, shape index: {}]
  %s3 = inlined_call_operand.vmem [shape: bf16[128,128], index: 3, kind: input, shape index: {}]
  %s4 = inlined_call_operand.vmem [shape: f32[1,128], index: 4, kind: input, shape index: {}]
  %s5 = inlined_call_operand.vmem [shape: bf16[3,128], index: 5, kind: input, shape index: {}]
  %s6 = inlined_call_operand.vmem [shape: f32[3,1], index: 6, kind: input, shape index: {}]
  %s7 = inlined_call_operand.hbm [shape: f32[3,256], index: 7, kind: output, shape index: {}]
  %s8 = sld [smem:[#allocation0]]
  $region61: #{tpu_custom_call.1} parent=0
    _
  %s10 = ssub.s32 1, %s8
  %s11 = scalar_select 0, %s10, %s8
  $region1: #{tpu_custom_call.1} parent=0
    #allocation2 [shape = 'u8[4096]{0}', space=vmem, size = 0x1000, scoped, tag = 'output window, operand 0']
    #allocation3 [shape = 's32[2]{0}', space=sflag, size = 0x8, scoped, tag = 'scoped memory for tpu_custom_call.1']
    %12 = vsyncpa [#allocation3], 0
    %s13 = scalar_lea.sflag [#allocation3], 1
    %14 = vsyncpa %s13, 0
    loop: start=0, step=1, limit=4
    $region2: #{tpu_custom_call.1} parent=1 // loop_pre_header
      _
    $region3: #{tpu_custom_call.1} parent=1 // loop_header
      %s16 = sphi 0, %s20
      %p17 = scmp.ge.s32.totalorder %s16, 4
      %s26 = sphi 0, %s28
      %s29 = sphi 0, %s26
      %s30 = sphi 0, %s29
      %s46 = sphi 0, %s30
      %s50 = sphi 0, %s50
      %s52 = sphi 0, %s50
      %s53 = sphi 0, %s52
      %s67 = sphi 0, %s53
      %s71 = sphi 0, %s71
      %s73 = sphi 0, %s71
      %s74 = sphi 0, %s73
      %s88 = sphi 0, %s74
      %s92 = sphi 0, %s92
      %s94 = sphi 0, %s92
      %s95 = sphi 0, %s94
      %s109 = sphi 0, %s95
      %s113 = sphi 0, %s113
      %s115 = sphi 0, %s113
      %s116 = sphi 0, %s115
      %s130 = sphi 0, %s116
      %s134 = sphi 0, %s134
      %s136 = sphi 0, %s134
      %s137 = sphi 0, %s136
      %s151 = sphi 0, %s137
      %s155 = sphi 0, %s155
      %s157 = sphi 0, %s155
      %s158 = sphi 0, %s157
      %s172 = sphi 0, %s158
      %s178 = sphi 0, %s180
      %s181 = sphi 0, %s178
      %s182 = sphi 0, %s181
      %s198 = sphi 0, %s182
    $region4: #{tpu_custom_call.1} parent=1 // loop_header_branch
      %19 = sbr.rel (%p17) target = $region8
    $region5: #{tpu_custom_call.1} parent=1 // loop_body
      %s21 = ssub.s32 %s16, 1
      %s22 = ssub.s32 %s16, 2
      %s23 = sadd.s32 %s16, 1
      %s24 = ssub.s32 %s16, %s23
      %p25 = scmp.eq.s32.totalorder %s24, 0
      %s27 = sadd.s32 %s26, 1
      %s28 = scalar_select %p25, %s26, %s27
      %p31 = pneg %p25
      %p32 = scmp.eq.s32.totalorder %s16, 1
      %p33 = por %p31, %p32
      %p34 = scmp.ne.s32.totalorder %s26, %s29
      %p35 = scmp.eq.s32.totalorder %s16, 0
      %p36 = por %p34, %p35
      %p37 = scmp.ne.s32.totalorder %s26, %s29
      %p38 = scmp.eq.s32.totalorder %s21, 1
      %p39 = por %p37, %p38
      %p40 = scmp.ne.s32.totalorder %s29, %s30
      %p41 = scmp.eq.s32.totalorder %s21, 0
      %p42 = por %p40, %p41
      %p43 = scmp.ne.s32.totalorder %s29, %s30
      %p44 = scmp.eq.s32.totalorder %s22, 1
      %p45 = por %p43, %p44
      %p47 = scmp.ne.s32.totalorder %s30, %s46
      %p48 = scmp.eq.s32.totalorder %s22, 0
      %p49 = por %p47, %p48
      %s51 = sadd.s32 %s50, 1
      %p54 = scmp.eq.s32.totalorder %s16, 1
      %p55 = scmp.ne.s32.totalorder %s50, %s52
      %p56 = scmp.eq.s32.totalorder %s16, 0
      %p57 = por %p55, %p56
      %p58 = scmp.ne.s32.totalorder %s50, %s52
      %p59 = scmp.eq.s32.totalorder %s21, 1
      %p60 = por %p58, %p59
      %p61 = scmp.ne.s32.totalorder %s52, %s53
      %p62 = scmp.eq.s32.totalorder %s21, 0
      %p63 = por %p61, %p62
      %p64 = scmp.ne.s32.totalorder %s52, %s53
      %p65 = scmp.eq.s32.totalorder %s22, 1
      %p66 = por %p64, %p65
      %p68 = scmp.ne.s32.totalorder %s53, %s67
      %p69 = scmp.eq.s32.totalorder %s22, 0
      %p70 = por %p68, %p69
      %s72 = sadd.s32 %s71, 1
      %p75 = scmp.eq.s32.totalorder %s16, 1
      %p76 = scmp.ne.s32.totalorder %s71, %s73
      %p77 = scmp.eq.s32.totalorder %s16, 0
      %p78 = por %p76, %p77
      %p79 = scmp.ne.s32.totalorder %s71, %s73
      %p80 = scmp.eq.s32.totalorder %s21, 1
      %p81 = por %p79, %p80
      %p82 = scmp.ne.s32.totalorder %s73, %s74
      %p83 = scmp.eq.s32.totalorder %s21, 0
      %p84 = por %p82, %p83
      %p85 = scmp.ne.s32.totalorder %s73, %s74
      %p86 = scmp.eq.s32.totalorder %s22, 1
      %p87 = por %p85, %p86
      %p89 = scmp.ne.s32.totalorder %s74, %s88
      %p90 = scmp.eq.s32.totalorder %s22, 0
      %p91 = por %p89, %p90
      %s93 = sadd.s32 %s92, 1
      %p96 = scmp.eq.s32.totalorder %s16, 1
      %p97 = scmp.ne.s32.totalorder %s92, %s94
      %p98 = scmp.eq.s32.totalorder %s16, 0
      %p99 = por %p97, %p98
      %p100 = scmp.ne.s32.totalorder %s92, %s94
      %p101 = scmp.eq.s32.totalorder %s21, 1
      %p102 = por %p100, %p101
      %p103 = scmp.ne.s32.totalorder %s94, %s95
      %p104 = scmp.eq.s32.totalorder %s21, 0
      %p105 = por %p103, %p104
      %p106 = scmp.ne.s32.totalorder %s94, %s95
      %p107 = scmp.eq.s32.totalorder %s22, 1
      %p108 = por %p106, %p107
      %p110 = scmp.ne.s32.totalorder %s95, %s109
      %p111 = scmp.eq.s32.totalorder %s22, 0
      %p112 = por %p110, %p111
      %s114 = sadd.s32 %s113, 1
      %p117 = scmp.eq.s32.totalorder %s16, 1
      %p118 = scmp.ne.s32.totalorder %s113, %s115
      %p119 = scmp.eq.s32.totalorder %s16, 0
      %p120 = por %p118, %p119
      %p121 = scmp.ne.s32.totalorder %s113, %s115
      %p122 = scmp.eq.s32.totalorder %s21, 1
      %p123 = por %p121, %p122
      %p124 = scmp.ne.s32.totalorder %s115, %s116
      %p125 = scmp.eq.s32.totalorder %s21, 0
      %p126 = por %p124, %p125
      %p127 = scmp.ne.s32.totalorder %s115, %s116
      %p128 = scmp.eq.s32.totalorder %s22, 1
      %p129 = por %p127, %p128
      %p131 = scmp.ne.s32.totalorder %s116, %s130
      %p132 = scmp.eq.s32.totalorder %s22, 0
      %p133 = por %p131, %p132
      %s135 = sadd.s32 %s134, 1
      %p138 = scmp.eq.s32.totalorder %s16, 1
      %p139 = scmp.ne.s32.totalorder %s134, %s136
      %p140 = scmp.eq.s32.totalorder %s16, 0
      %p141 = por %p139, %p140
      %p142 = scmp.ne.s32.totalorder %s134, %s136
      %p143 = scmp.eq.s32.totalorder %s21, 1
      %p144 = por %p142, %p143
      %p145 = scmp.ne.s32.totalorder %s136, %s137
      %p146 = scmp.eq.s32.totalorder %s21, 0
      %p147 = por %p145, %p146
      %p148 = scmp.ne.s32.totalorder %s136, %s137
      %p149 = scmp.eq.s32.totalorder %s22, 1
      %p150 = por %p148, %p149
      %p152 = scmp.ne.s32.totalorder %s137, %s151
      %p153 = scmp.eq.s32.totalorder %s22, 0
      %p154 = por %p152, %p153
      %s156 = sadd.s32 %s155, 1
      %p159 = scmp.eq.s32.totalorder %s16, 1
      %p160 = scmp.ne.s32.totalorder %s155, %s157
      %p161 = scmp.eq.s32.totalorder %s16, 0
      %p162 = por %p160, %p161
      %p163 = scmp.ne.s32.totalorder %s155, %s157
      %p164 = scmp.eq.s32.totalorder %s21, 1
      %p165 = por %p163, %p164
      %p166 = scmp.ne.s32.totalorder %s157, %s158
      %p167 = scmp.eq.s32.totalorder %s21, 0
      %p168 = por %p166, %p167
      %p169 = scmp.ne.s32.totalorder %s157, %s158
      %p170 = scmp.eq.s32.totalorder %s22, 1
      %p171 = por %p169, %p170
      %p173 = scmp.ne.s32.totalorder %s158, %s172
      %p174 = scmp.eq.s32.totalorder %s22, 0
      %p175 = por %p173, %p174
      %s176 = ssub.s32 %s16, %s23
      %p177 = scmp.eq.s32.totalorder %s176, 0
      %s179 = sadd.s32 %s178, 1
      %s180 = scalar_select %p177, %s178, %s179
      %p183 = pneg %p177
      %p184 = scmp.eq.s32.totalorder %s16, 1
      %p185 = por %p183, %p184
      %p186 = scmp.ne.s32.totalorder %s178, %s181
      %p187 = scmp.eq.s32.totalorder %s16, 0
      %p188 = por %p186, %p187
      %p189 = scmp.ne.s32.totalorder %s178, %s181
      %p190 = scmp.eq.s32.totalorder %s21, 1
      %p191 = por %p189, %p190
      %p192 = scmp.ne.s32.totalorder %s181, %s182
      %p193 = scmp.eq.s32.totalorder %s21, 0
      %p194 = por %p192, %p193
      %p195 = scmp.ne.s32.totalorder %s181, %s182
      %p196 = scmp.eq.s32.totalorder %s22, 1
      %p197 = por %p195, %p196
      %p199 = scmp.ne.s32.totalorder %s182, %s198
      %p200 = scmp.eq.s32.totalorder %s22, 0
      %p201 = por %p199, %p200
      %p202 = scmp.le.s32.totalorder 1, %s16
      %p203 = scmp.lt.s32.totalorder %s16, 3
      %p204 = pnand %p202, %p203
      %p205 = pneg %p204
      // Predicated region
      $region9: #{tpu_custom_call.1} parent=5 // pred_check
        _
      $region10: #{tpu_custom_call.1} parent=5 // pred_check_branch
        %207 = sbr.rel (%p204) target = $region12
      $region11: #{tpu_custom_call.1} parent=5 // pred_region
        %s208 = ssub.s32 %s16, 1
        // Predicated region
        $region13: #{tpu_custom_call.1} parent=11 // pred_check
          %p209 = pneg %p63
        $region14: #{tpu_custom_call.1} parent=11 // pred_check_branch
          %211 = sbr.rel (%p209) target = $region16
        $region15: #{tpu_custom_call.1} parent=11 // pred_region
          _
        $region16: #{tpu_custom_call.1} parent=11 // pred_fallthru
          _
        // Predicated region
        $region17: #{tpu_custom_call.1} parent=11 // pred_check
          %p212 = pneg %p84
        $region18: #{tpu_custom_call.1} parent=11 // pred_check_branch
          %214 = sbr.rel (%p212) target = $region20
        $region19: #{tpu_custom_call.1} parent=11 // pred_region
          _
        $region20: #{tpu_custom_call.1} parent=11 // pred_fallthru
          _
        // Predicated region
        $region21: #{tpu_custom_call.1} parent=11 // pred_check
          %p215 = pneg %p105
        $region22: #{tpu_custom_call.1} parent=11 // pred_check_branch
          %217 = sbr.rel (%p215) target = $region24
        $region23: #{tpu_custom_call.1} parent=11 // pred_region
          _
        $region24: #{tpu_custom_call.1} parent=11 // pred_fallthru
          _
        // Predicated region
        $region25: #{tpu_custom_call.1} parent=11 // pred_check
          %p218 = pneg %p126
        $region26: #{tpu_custom_call.1} parent=11 // pred_check_branch
          %220 = sbr.rel (%p218) target = $region28
        $region27: #{tpu_custom_call.1} parent=11 // pred_region
          _
        $region28: #{tpu_custom_call.1} parent=11 // pred_fallthru
          _
        // Predicated region
        $region29: #{tpu_custom_call.1} parent=11 // pred_check
          %p221 = pneg %p147
        $region30: #{tpu_custom_call.1} parent=11 // pred_check_branch
          %223 = sbr.rel (%p221) target = $region32
        $region31: #{tpu_custom_call.1} parent=11 // pred_region
          _
        $region32: #{tpu_custom_call.1} parent=11 // pred_fallthru
          _
        // Predicated region
        $region33: #{tpu_custom_call.1} parent=11 // pred_check
          %p224 = pneg %p168
        $region34: #{tpu_custom_call.1} parent=11 // pred_check_branch
          %226 = sbr.rel (%p224) target = $region36
        $region35: #{tpu_custom_call.1} parent=11 // pred_region
          _
        $region36: #{tpu_custom_call.1} parent=11 // pred_fallthru
          _
      $region12: #{tpu_custom_call.1} parent=5 // pred_fallthru
        _
      %p227 = scmp.lt.s32.totalorder %s16, 2
      // Predicated region
      $region37: #{tpu_custom_call.1} parent=5 // pred_check
        %p228 = pneg %p227
      $region38: #{tpu_custom_call.1} parent=5 // pred_check_branch
        %230 = sbr.rel (%p228) target = $region40
      $region39: #{tpu_custom_call.1} parent=5 // pred_region
        // Predicated region
        $region41: #{tpu_custom_call.1} parent=39 // pred_check
          %p231 = pneg %p36
        $region42: #{tpu_custom_call.1} parent=39 // pred_check_branch
          %233 = sbr.rel (%p231) target = $region44
        $region43: #{tpu_custom_call.1} parent=39 // pred_region
          %s234 = smul.u32 16, %s16
          %p235 = scmp.lt.s32.totalorder %s234, 31
          %s236 = scalar_select %p235, %s234, 31
          %s237 = smul.addr %s236, 8
          %s238 = scalar_lea.vmem %s0, %s237
          %s239 = smul.u32 16, %s16
        $region44: #{tpu_custom_call.1} parent=39 // pred_fallthru
          _
      $region40: #{tpu_custom_call.1} parent=5 // pred_fallthru
        _
      %p240 = scmp.le.s32.totalorder 1, %s16
      %p241 = scmp.lt.s32.totalorder %s16, 3
      %p242 = pnand %p240, %p241
      %p243 = pneg %p242
      // Predicated region
      $region45: #{tpu_custom_call.1} parent=5 // pred_check
        _
      $region46: #{tpu_custom_call.1} parent=5 // pred_check_branch
        %245 = sbr.rel (%p242) target = $region48
      $region47: #{tpu_custom_call.1} parent=5 // pred_region
        %s246 = ssub.s32 %s16, 1
        %s247 = smul.u32 16, %s21
        %p248 = scmp.lt.s32.totalorder %s247, 31
        %s249 = scalar_select %p248, %s247, 31
        %s250 = smul.addr %s249, 8
        %s251 = scalar_lea.vmem %s0, %s250
        %p252 = pneg %p42
        %p253 = pneg %p39
        %p254 = pneg %p63
        %p255 = pneg %p60
        %p256 = pneg %p84
        %p257 = pneg %p81
        %p258 = pneg %p105
        %p259 = pneg %p102
        %p260 = pneg %p126
        %p261 = pneg %p123
        %p262 = pneg %p147
        %p263 = pneg %p144
        %p264 = pneg %p168
        %p265 = pneg %p165
        %p266 = pneg %p194
        %p267 = pneg %p191
        %s268 = sand.u32 %s181, 1
        %s269 = scalar_lea.sflag [#allocation3], %s268
        %s270 = sand.u32 %s181, 1
        %s271 = smul.addr %s270, 4
        %s272 = scalar_lea.vmem [#allocation2], %s271
        %s273 = smul.u32 16, %s21
        %p274 = scmp.lt.s32.totalorder %s273, 31
        %s275 = scalar_select %p274, %s273, 31
        %s276 = smul.addr %s275, 8
        %s277 = scalar_lea.vmem %s0, %s276
        %s278 = smul.u32 16, %s21
        %v280 = vld [vmem:[%s277] sm:$0xff]
        %v281 = vld [vmem:[%s277 + $0x8] sm:$0xff]
        %v282 = vld [vmem:[%s277 + $0x10] sm:$0xff]
        %v283 = vld [vmem:[%s277 + $0x18] sm:$0xff]
        %v284 = vld [vmem:[%s277 + $0x20] sm:$0xff]
        %v285 = vld [vmem:[%s277 + $0x28] sm:$0xff]
        %v286 = vld [vmem:[%s277 + $0x30] sm:$0xff]
        %v287 = vld [vmem:[%s277 + $0x38] sm:$0xff]
        %v288 = vld [vmem:[%s277 + $0x40] sm:$0xff]
        %v289 = vld [vmem:[%s277 + $0x48] sm:$0xff]
        %v290 = vld [vmem:[%s277 + $0x50] sm:$0xff]
        %v291 = vld [vmem:[%s277 + $0x58] sm:$0xff]
        %v292 = vld [vmem:[%s277 + $0x60] sm:$0xff]
        %v293 = vld [vmem:[%s277 + $0x68] sm:$0xff]
        %v294 = vld [vmem:[%s277 + $0x70] sm:$0xff]
        %v295 = vld [vmem:[%s277 + $0x78] sm:$0xff]
        %v296 = vpack.c.bf16 %v281, %v280
        %v297 = vpack.c.bf16 %v283, %v282
        %v298 = vpack.c.bf16 %v285, %v284
        %v299 = vpack.c.bf16 %v287, %v286
        %v300 = vpack.c.bf16 %v289, %v288
        %v301 = vpack.c.bf16 %v291, %v290
        %v302 = vpack.c.bf16 %v293, %v292
        %v303 = vpack.c.bf16 %v295, %v294
        %v304 = vld [vmem:[%s1] sm:$0xf]
        %v305 = vld [vmem:[%s1 + $0x4] sm:$0xf]
        %v306 = vld [vmem:[%s2] sm:$0x1]
        %v308 = vperm.slane %v306, 0
        %v312 = vunpack.c.l.b16 %v304
        %v313 = vunpack.c.l.b16 %v305
        %v314 = vpack.c.b16 %v313, %v312
        %vm316 = vcmask 130048
        %v318 = vsel %vm316, %v296, 0
        %v321 = vsel %vm316, %v297, 0
        %v324 = vsel %vm316, %v298, 0
        %v327 = vsel %vm316, %v299, 0
        %v330 = vsel %vm316, %v300, 0
        %v333 = vsel %vm316, %v301, 0
        %v336 = vsel %vm316, %v302, 0
        %v339 = vsel %vm316, %v303, 0
        %341 = vmatpush.bf16.msra.mxu0 0
        %342 = vmatpush.bf16.msra.mxu0 0
        %343 = vmatpush.bf16.msra.mxu0 0
        %344 = vmatpush.bf16.msra.mxu0 0
        %345 = vmatpush.bf16.msra.mxu0 0
        %346 = vmatpush.bf16.msra.mxu0 0
        %347 = vmatpush.bf16.msra.mxu0 0
        %348 = vmatpush.bf16.msra.mxu0 %v314
        %349 = vmatmul.bf16.gmra.mxu0 %v318
        %v350 = vpop.f32.mrf.mxu0
        %v351 = vadd.f32 %v308, %v350
        %v352 = vpop.f32.mrf.mxu0
        %v353 = vadd.f32 %v308, %v352
        %354 = vmatmul.bf16.gmra.mxu0 %v321
        %v355 = vpop.f32.mrf.mxu0
        %v356 = vadd.f32 %v308, %v355
        %v357 = vpop.f32.mrf.mxu0
        %v358 = vadd.f32 %v308, %v357
        %359 = vmatmul.bf16.gmra.mxu0 %v324
        %v360 = vpop.f32.mrf.mxu0
        %v361 = vadd.f32 %v308, %v360
        %v362 = vpop.f32.mrf.mxu0
        %v363 = vadd.f32 %v308, %v362
        %364 = vmatmul.bf16.gmra.mxu0 %v327
        %v365 = vpop.f32.mrf.mxu0
        %v366 = vadd.f32 %v308, %v365
        %v367 = vpop.f32.mrf.mxu0
        %v368 = vadd.f32 %v308, %v367
        %369 = vmatmul.bf16.gmra.mxu0 %v330
        %v370 = vpop.f32.mrf.mxu0
        %v371 = vadd.f32 %v308, %v370
        %v372 = vpop.f32.mrf.mxu0
        %v373 = vadd.f32 %v308, %v372
        %374 = vmatmul.bf16.gmra.mxu0 %v333
        %v375 = vpop.f32.mrf.mxu0
        %v376 = vadd.f32 %v308, %v375
        %v377 = vpop.f32.mrf.mxu0
        %v378 = vadd.f32 %v308, %v377
        %379 = vmatmul.bf16.gmra.mxu0 %v336
        %v380 = vpop.f32.mrf.mxu0
        %v381 = vadd.f32 %v308, %v380
        %v382 = vpop.f32.mrf.mxu0
        %v383 = vadd.f32 %v308, %v382
        %384 = vmatmul.bf16.gmra.mxu0 %v339
        %v385 = vpop.f32.mrf.mxu0
        %v386 = vadd.f32 %v308, %v385
        %v387 = vpop.f32.mrf.mxu0
        %v388 = vadd.f32 %v308, %v387
        %389 = vdwg.mxu0
        %v390 = vmax.f32 %v351, 0.0
        %v391 = vmax.f32 %v353, 0.0
        %v392 = vmax.f32 %v356, 0.0
        %v393 = vmax.f32 %v358, 0.0
        %v394 = vmax.f32 %v361, 0.0
        %v395 = vmax.f32 %v363, 0.0
        %v396 = vmax.f32 %v366, 0.0
        %v397 = vmax.f32 %v368, 0.0
        %v398 = vmax.f32 %v371, 0.0
        %v399 = vmax.f32 %v373, 0.0
        %v400 = vmax.f32 %v376, 0.0
        %v401 = vmax.f32 %v378, 0.0
        %v402 = vmax.f32 %v381, 0.0
        %v403 = vmax.f32 %v383, 0.0
        %v404 = vmax.f32 %v386, 0.0
        %v405 = vmax.f32 %v388, 0.0
        %v406 = vpack.c.bf16 %v391, %v390
        %v407 = vpack.c.bf16 %v393, %v392
        %v408 = vpack.c.bf16 %v395, %v394
        %v409 = vpack.c.bf16 %v397, %v396
        %v410 = vpack.c.bf16 %v399, %v398
        %v411 = vpack.c.bf16 %v401, %v400
        %v412 = vpack.c.bf16 %v403, %v402
        %v413 = vpack.c.bf16 %v405, %v404
        %v414 = vld [vmem:[%s3] sm:$0xf]
        %v415 = vld [vmem:[%s3 + $0x4] sm:$0xf]
        %v416 = vld [vmem:[%s3 + $0x8] sm:$0xf]
        %v417 = vld [vmem:[%s3 + $0xc] sm:$0xf]
        %v418 = vld [vmem:[%s3 + $0x10] sm:$0xf]
        %v419 = vld [vmem:[%s3 + $0x14] sm:$0xf]
        %v420 = vld [vmem:[%s3 + $0x18] sm:$0xf]
        %v421 = vld [vmem:[%s3 + $0x1c] sm:$0xf]
        %v422 = vld [vmem:[%s3 + $0x20] sm:$0xf]
        %v423 = vld [vmem:[%s3 + $0x24] sm:$0xf]
        %v424 = vld [vmem:[%s3 + $0x28] sm:$0xf]
        %v425 = vld [vmem:[%s3 + $0x2c] sm:$0xf]
        %v426 = vld [vmem:[%s3 + $0x30] sm:$0xf]
        %v427 = vld [vmem:[%s3 + $0x34] sm:$0xf]
        %v428 = vld [vmem:[%s3 + $0x38] sm:$0xf]
        %v429 = vld [vmem:[%s3 + $0x3c] sm:$0xf]
        %v430 = vld [vmem:[%s4] sm:$0x1]
        %v432 = vperm.slane %v430, 0
        %v450 = vunpack.c.l.b16 %v414
        %v451 = vunpack.c.l.b16 %v415
        %v452 = vunpack.c.l.b16 %v416
        %v453 = vunpack.c.l.b16 %v417
        %v454 = vunpack.c.l.b16 %v418
        %v455 = vunpack.c.l.b16 %v419
        %v456 = vunpack.c.l.b16 %v420
        %v457 = vunpack.c.l.b16 %v421
        %v458 = vunpack.c.l.b16 %v422
        %v459 = vunpack.c.l.b16 %v423
        %v460 = vunpack.c.l.b16 %v424
        %v461 = vunpack.c.l.b16 %v425
        %v462 = vunpack.c.l.b16 %v426
        %v463 = vunpack.c.l.b16 %v427
        %v464 = vunpack.c.l.b16 %v428
        %v465 = vunpack.c.l.b16 %v429
        %v466 = vpack.c.b16 %v451, %v450
        %v467 = vpack.c.b16 %v453, %v452
        %v468 = vpack.c.b16 %v455, %v454
        %v469 = vpack.c.b16 %v457, %v456
        %v470 = vpack.c.b16 %v459, %v458
        %v471 = vpack.c.b16 %v461, %v460
        %v472 = vpack.c.b16 %v463, %v462
        %v473 = vpack.c.b16 %v465, %v464
        %482 = vmatpush.bf16.msra.mxu0 %v473
        %483 = vmatpush.bf16.msra.mxu0 %v472
        %484 = vmatpush.bf16.msra.mxu0 %v471
        %485 = vmatpush.bf16.msra.mxu0 %v470
        %486 = vmatpush.bf16.msra.mxu0 %v469
        %487 = vmatpush.bf16.msra.mxu0 %v468
        %488 = vmatpush.bf16.msra.mxu0 %v467
        %489 = vmatpush.bf16.msra.mxu0 %v466
        %490 = vmatmul.bf16.gmra.mxu0 %v406
        %v491 = vpop.f32.mrf.mxu0
        %v492 = vadd.f32 %v432, %v491
        %v493 = vpop.f32.mrf.mxu0
        %v494 = vadd.f32 %v432, %v493
        %495 = vmatmul.bf16.gmra.mxu0 %v407
        %v496 = vpop.f32.mrf.mxu0
        %v497 = vadd.f32 %v432, %v496
        %v498 = vpop.f32.mrf.mxu0
        %v499 = vadd.f32 %v432, %v498
        %500 = vmatmul.bf16.gmra.mxu0 %v408
        %v501 = vpop.f32.mrf.mxu0
        %v502 = vadd.f32 %v432, %v501
        %v503 = vpop.f32.mrf.mxu0
        %v504 = vadd.f32 %v432, %v503
        %505 = vmatmul.bf16.gmra.mxu0 %v409
        %v506 = vpop.f32.mrf.mxu0
        %v507 = vadd.f32 %v432, %v506
        %v508 = vpop.f32.mrf.mxu0
        %v509 = vadd.f32 %v432, %v508
        %510 = vmatmul.bf16.gmra.mxu0 %v410
        %v511 = vpop.f32.mrf.mxu0
        %v512 = vadd.f32 %v432, %v511
        %v513 = vpop.f32.mrf.mxu0
        %v514 = vadd.f32 %v432, %v513
        %515 = vmatmul.bf16.gmra.mxu0 %v411
        %v516 = vpop.f32.mrf.mxu0
        %v517 = vadd.f32 %v432, %v516
        %v518 = vpop.f32.mrf.mxu0
        %v519 = vadd.f32 %v432, %v518
        %520 = vmatmul.bf16.gmra.mxu0 %v412
        %v521 = vpop.f32.mrf.mxu0
        %v522 = vadd.f32 %v432, %v521
        %v523 = vpop.f32.mrf.mxu0
        %v524 = vadd.f32 %v432, %v523
        %525 = vmatmul.bf16.gmra.mxu0 %v413
        %v526 = vpop.f32.mrf.mxu0
        %v527 = vadd.f32 %v432, %v526
        %v528 = vpop.f32.mrf.mxu0
        %v529 = vadd.f32 %v432, %v528
        %530 = vdwg.mxu0
        %v531 = vmax.f32 %v492, 0.0
        %v532 = vmax.f32 %v494, 0.0
        %v533 = vmax.f32 %v497, 0.0
        %v534 = vmax.f32 %v499, 0.0
        %v535 = vmax.f32 %v502, 0.0
        %v536 = vmax.f32 %v504, 0.0
        %v537 = vmax.f32 %v507, 0.0
        %v538 = vmax.f32 %v509, 0.0
        %v539 = vmax.f32 %v512, 0.0
        %v540 = vmax.f32 %v514, 0.0
        %v541 = vmax.f32 %v517, 0.0
        %v542 = vmax.f32 %v519, 0.0
        %v543 = vmax.f32 %v522, 0.0
        %v544 = vmax.f32 %v524, 0.0
        %v545 = vmax.f32 %v527, 0.0
        %v546 = vmax.f32 %v529, 0.0
        %v547 = vld [vmem:[%s5] sm:$0x3]
        %v548 = vpack.c.bf16 %v532, %v531
        %v549 = vpack.c.bf16 %v534, %v533
        %v550 = vpack.c.bf16 %v536, %v535
        %v551 = vpack.c.bf16 %v538, %v537
        %v552 = vpack.c.bf16 %v540, %v539
        %v553 = vpack.c.bf16 %v542, %v541
        %v554 = vpack.c.bf16 %v544, %v543
        %v555 = vpack.c.bf16 %v546, %v545
        %v556 = vld [vmem:[%s6] sm:$0x7]
        %558 = vset.pattern.permute.xlu0 0
        %559 = vperm.xlu0 %558, %v556
        %v560 = vpop.permute.xlu0 %559
        %562 = vmatpush.bf16.xpose.msra.mxu0 %v555
        %563 = vmatpush.bf16.xpose.msra.mxu0 %v554
        %564 = vmatpush.bf16.xpose.msra.mxu0 %v553
        %565 = vmatpush.bf16.xpose.msra.mxu0 %v552
        %566 = vmatpush.bf16.xpose.msra.mxu0 %v551
        %567 = vmatpush.bf16.xpose.msra.mxu0 %v550
        %568 = vmatpush.bf16.xpose.msra.mxu0 %v549
        %569 = vmatpush.bf16.xpose.msra.mxu0 %v548
        %570 = vmatmul.bf16.gmra.mxu0 %v547
        %v571 = vpop.f32.mrf.mxu0
        %v572 = vadd.f32 %v560, %v571
        %v573 = vpop.f32.mrf.mxu0
        %574 = vdwg.mxu0
        %575 = vst [vmem:[%s272] sm:$0x7] %v572
        %s576 = sand.u32 %s181, 1
        %s577 = scalar_lea.sflag [#allocation3], %s576
        %s578 = sand.u32 %s181, 1
        %s579 = smul.addr %s578, 4
        %s580 = scalar_lea.vmem [#allocation2], %s579
        // Predicated region
        $region49: #{tpu_custom_call.1} parent=47 // pred_check
          %p581 = pneg %p191
        $region50: #{tpu_custom_call.1} parent=47 // pred_check_branch
          %583 = sbr.rel (%p581) target = $region52
        $region51: #{tpu_custom_call.1} parent=47 // pred_region
          %585 = vsyncadd %s577, 0
          %s586 = smul.addr %s21, 4
          %s587 = scalar_lea.hbm %s7, %s586
          %s589 = sshll.u32 %s580, 4
          %s590 = int_to_ptr.vmem [resolvable:$true] %s589
          %s591 = sshll.u32 %s587, 4
          %s592 = int_to_ptr.hbm [resolvable:$true] %s591
          %594 = dma.vmem_to_hbm [thread:$0]  %s590, 64, %s592, %s577
        $region52: #{tpu_custom_call.1} parent=47 // pred_fallthru
          _
      $region48: #{tpu_custom_call.1} parent=5 // pred_fallthru
        _
      %p595 = scmp.le.s32.totalorder 2, %s16
      // Predicated region
      $region53: #{tpu_custom_call.1} parent=5 // pred_check
        %p596 = pneg %p595
      $region54: #{tpu_custom_call.1} parent=5 // pred_check_branch
        %598 = sbr.rel (%p596) target = $region56
      $region55: #{tpu_custom_call.1} parent=5 // pred_region
        %s599 = ssub.s32 %s16, 2
        // Predicated region
        $region57: #{tpu_custom_call.1} parent=55 // pred_check
          %p600 = pneg %p197
        $region58: #{tpu_custom_call.1} parent=55 // pred_check_branch
          %602 = sbr.rel (%p600) target = $region60
        $region59: #{tpu_custom_call.1} parent=55 // pred_region
          %s603 = sand.u32 %s182, 1
          %s604 = scalar_lea.sflag [#allocation3], %s603
          %s605 = sand.u32 %s182, 1
          %s606 = smul.addr %s605, 4
          %s607 = scalar_lea.vmem [#allocation2], %s606
          %609 = dma.done %s604, 64
        $region60: #{tpu_custom_call.1} parent=55 // pred_fallthru
          _
      $region56: #{tpu_custom_call.1} parent=5 // pred_fallthru
        _
    $region6: #{tpu_custom_call.1} parent=1 // loop_footer
      %s20 = sadd.s32 1, %s16
    $region7: #{tpu_custom_call.1} parent=1 // loop_footer_branch
      %15 = sbr.rel target = $region3
    $region8: #{tpu_custom_call.1} parent=1 // loop_exit
      _
    %610 = vsyncpa [#allocation3], 1
    %s611 = scalar_lea.sflag [#allocation3], 1
    %612 = vsyncpa %s611, 1

</llo_original>
